<compile_context>
chip_gen: v7x
topology: tpu7x:2x2x1
jax: 0.10.0
libtpu: 0.0.40
codegen_flags: <defaults>
</compile_context>

<pallas_src>
import jax
import jax.numpy as jnp
from jax.experimental import pallas as pl
from jax.experimental.pallas import tpu as pltpu

LANE = 128
MAX_C = 8192  # widest lane slab considered (32 KiB/row @ f32)


def _sigmoid_kernel(x_ref, o_ref):
    # EUP exp/recip + VPU ops; whole tile at once. HBM BW is the binding unit.
    o_ref[...] = jax.nn.sigmoid(x_ref[...])


def _cdiv(a: int, b: int) -> int:
    return -(-a // b)


def _round_up(a: int, b: int) -> int:
    return ((a + b - 1) // b) * b


def _chip_config():
    """(target_block_bytes, vmem_limit_bytes, multi_tensorcore) per generation."""
    kind = ""
    try:
        kind = jax.devices()[0].device_kind.lower()
    except Exception:
        pass
    if "v7" in kind:
        # 3.2 TB/s HBM but only 64 MiB physical VMEM per TC; 2 TCs per chip.
        return 4 * 1024 * 1024, 40 * 1024 * 1024, True
    if "v6" in kind:
        return 8 * 1024 * 1024, 64 * 1024 * 1024, False
    if "v5" in kind:
        return 4 * 1024 * 1024, 32 * 1024 * 1024, False
    # Unknown chip: stay inside the default scoped VMEM.
    return 2 * 1024 * 1024, None, False


def _pick_lane_width(total: int, sub: int) -> int:
    """Widest multiple-of-128 divisor of `total` (<= MAX_C), preferring rows >= sub."""
    best_any = 0
    c = min(MAX_C, (total // LANE) * LANE)
    while c >= LANE:
        if total % c == 0:
            if best_any == 0:
                best_any = c            # widest divisor overall (fallback)
            if total // c >= sub:
                return c                # widest divisor with a full sublane pack
        c -= LANE
    return best_any


def _sigmoid_slab(x2d, rows, C, target_block_bytes, vmem_limit, multi_tc, sub):
    """Run the sigmoid kernel over a lane-dense (rows, C) slab."""
    itemsize = jnp.dtype(x2d.dtype).itemsize

    # Row tile: ~target_block_bytes per block, multiple of the sublane pack.
    tr = max(sub, (target_block_bytes // (C * itemsize)) // sub * sub)
    if rows <= tr:
        if multi_tc and rows >= 2 * sub:
            # Split so both v7x TensorCores get work.
            tr = _round_up(_cdiv(rows, 2), sub)
        else:
            tr = rows                    # single full-extent block
    grid = _cdiv(rows, tr)
    if multi_tc and grid > 1 and grid % 2 == 1:
        # Even grid so work divides across v7x's two TensorCores.
        tr = max(sub, _round_up(_cdiv(rows, grid + 1), sub))
        grid = _cdiv(rows, tr)

    n = rows * C
    return pl.pallas_call(
        _sigmoid_kernel,
        out_shape=jax.ShapeDtypeStruct((rows, C), x2d.dtype),
        grid_spec=pltpu.PrefetchScalarGridSpec(
            num_scalar_prefetch=0,
            grid=(grid,),
            in_specs=[pl.BlockSpec((tr, C), lambda i: (i, 0))],
            out_specs=pl.BlockSpec((tr, C), lambda i: (i, 0)),
        ),
        compiler_params=pltpu.CompilerParams(
            dimension_semantics=("parallel",),
            vmem_limit_bytes=vmem_limit,
        ),
        cost_estimate=pl.CostEstimate(
            flops=4 * n,
            transcendentals=n,
            bytes_accessed=2 * n * itemsize,
        ),
    )(x2d)


@jax.jit
def tudui_forward(x: jax.Array) -> jax.Array:
    """Elementwise sigmoid (Tudui.forward) computed in Pallas TPU kernels.

    x: any shape/dtype (NCHW (B, C, H, W) float32 in the original module).
    returns: same shape/dtype.
    """
    orig_shape = x.shape
    dtype = x.dtype
    total = x.size
    if total == 0:
        return x

    itemsize = jnp.dtype(dtype).itemsize
    # dtype-aware sublane pack: f32 -> 8, bf16 -> 16, int8 -> 32
    sub = max(8, 8 * (4 // max(1, itemsize)))

    target_block_bytes, vmem_limit, multi_tc = _chip_config()

    x_flat = jnp.ravel(x)                 # contiguous -> free reshape under jit
    head = (total // LANE) * LANE         # 128-aligned prefix -> wide slab
    tail = total - head                   # < 128 leftover elements

    parts = []
    if head:
        C = _pick_lane_width(head, sub)
        rows = head // C
        head_flat = x_flat if tail == 0 else x_flat[:head]
        head_out = _sigmoid_slab(head_flat.reshape(rows, C), rows, C,
                                 target_block_bytes, vmem_limit, multi_tc, sub)
        parts.append(head_out.reshape(-1))
    if tail:
        # Tiny remainder: full-extent (1, tail) block, masked lane store.
        # No padded copy of the full array is ever built.
        tail_out = pl.pallas_call(
            _sigmoid_kernel,
            out_shape=jax.ShapeDtypeStruct((1, tail), dtype),
        )(x_flat[head:].reshape(1, tail))
        parts.append(tail_out.reshape(-1))

    # TODO(synk): for misaligned sizes the concat below is one extra output
    # pass; it could be removed with a manual-DMA kernel writing both pieces
    # into a single flat output buffer.
    out_flat = parts[0] if len(parts) == 1 else jnp.concatenate(parts)
    return out_flat.reshape(orig_shape)


if __name__ == "__main__":
    key = jax.random.PRNGKey(0)

    # Small NCHW input consistent with the module's forward.
    x = jax.random.normal(key, (2, 4, 16, 16), dtype=jnp.float32)
    out = jax.block_until_ready(tudui_forward(x))
    ref = jax.nn.sigmoid(x)
    assert out.shape == x.shape and out.dtype == x.dtype
    assert jnp.allclose(out, ref, atol=1e-6, rtol=1e-6)

    # Exercise the non-128-aligned head+tail path as well.
    y = jax.random.normal(jax.random.PRNGKey(1), (2, 3, 43), dtype=jnp.float32)
    out_y = jax.block_until_ready(tudui_forward(y))
    assert jnp.allclose(out_y, jax.nn.sigmoid(y), atol=1e-6, rtol=1e-6)

    print("KERNEL_OK")
</pallas_src>

<mosaic_0001>
module attributes {stable_mosaic.version = 11 : i64} {
  func.func @_sigmoid_kernel(%arg0: i32, %arg1: memref<8x256xf32, #tpu.memory_space<vmem>>, %arg2: memref<8x256xf32, #tpu.memory_space<vmem>>) attributes {dimension_semantics = [#tpu.dimension_semantics<parallel>], iteration_bounds = array<i64: 1>, scalar_prefetch = 0 : i64, scratch_operands = 0 : i64, tpu.core_type = #tpu.core_type<tc>, window_params = [{transform_indices = @transform_0, window_bounds = array<i64: 8, 256>}, {transform_indices = @transform_1, window_bounds = array<i64: 8, 256>}]} {
    %c0 = arith.constant 0 : index
    %c0_0 = arith.constant 0 : index
    %0 = vector.load %arg1[%c0, %c0_0] : memref<8x256xf32, #tpu.memory_space<vmem>>, vector<8x256xf32>
    %1 = arith.negf %0 : vector<8x256xf32>
    %2 = math.exp %1 : vector<8x256xf32>
    %cst = arith.constant 1.000000e+00 : f32
    %3 = vector.broadcast %cst : f32 to vector<8x256xf32>
    %4 = arith.addf %3, %2 : vector<8x256xf32>
    %5 = arith.divf %3, %4 : vector<8x256xf32>
    %c0_1 = arith.constant 0 : index
    %c0_2 = arith.constant 0 : index
    %6 = vector.load %arg2[%c0_1, %c0_2] : memref<8x256xf32, #tpu.memory_space<vmem>>, vector<8x256xf32>
    tpu.vector_store %arg2[%c0_1, %c0_2], %5 {strides = array<i32>} : memref<8x256xf32, #tpu.memory_space<vmem>>, vector<8x256xf32>,
    return
  }
  func.func @transform_0(%arg0: i32) -> (i32, i32) {
    %c0_i32 = arith.constant 0 : i32
    %c0_i32_0 = arith.constant 0 : i32
    return %arg0, %c0_i32 : i32, i32
  }
  func.func @transform_1(%arg0: i32) -> (i32, i32) {
    %c0_i32 = arith.constant 0 : i32
    %c0_i32_0 = arith.constant 0 : i32
    return %arg0, %c0_i32 : i32, i32
  }
}

</mosaic_0001>

<llo_original>
// kernel: tudui_forward.1
$region0: #{tudui_forward.1}
  #allocation0 [shape = 'u32[]', space=smem, size = 0x4, offset = 0x4, fixed_abs, tag = 'smem constant byte address 0x4 - core index']
  #allocation1 [shape = 'u32[144,128]{1,0:T(1,128)}', space=vmem, size = 0x12000, scoped, tag = 'internal scratch']
  %s0 = inlined_call_operand.vmem [shape: f32[8,256], index: 0, kind: input, shape index: {}]
  %s1 = inlined_call_operand.vmem [shape: f32[8,256], index: 1, kind: output, shape index: {}]
  %s2 = sld [smem:[#allocation0]]
  $region14: #{tudui_forward.1} parent=0
    _
  %s4 = ssub.s32 1, %s2
  %s5 = scalar_select 0, %s4, %s2
  // Predicated region
  $region2: #{tudui_forward.1} parent=0 // pred_check
    _
  $region3: #{tudui_forward.1} parent=0 // pred_check_branch
    %7 = sbr.rel (0) target = $region5
  $region4: #{tudui_forward.1} parent=0 // pred_region
    _
  $region5: #{tudui_forward.1} parent=0 // pred_fallthru
    _
  %v8 = vld [vmem:[%s0] sm:$0xff]
  %v9 = vld [vmem:[%s0 + $0x8] sm:$0xff]
  %v10 = vxor.u32 %v8, 2147483648
  %v11 = vxor.u32 %v9, 2147483648
  %v12 = vmul.f32 %v10, 1.442695
  %v13 = vpow.pop %v12
  %v14 = vmul.f32 %v11, 1.442695
  %v15 = vpow.pop %v14
  %v16 = vadd.f32 %v13, 1.0
  %v17 = vadd.f32 %v15, 1.0
  %v18 = vrcp.pop %v16
  %v19 = vmul.f32 1.0, %v18
  %v20 = vrcp.pop %v17
  %v21 = vmul.f32 1.0, %v20
  %22 = vst [vmem:[%s1] sm:$0xff] %v19
  %23 = vst [vmem:[%s1 + $0x8] sm:$0xff] %v21
  // Predicated region
  $region6: #{tudui_forward.1} parent=0 // pred_check
    _
  $region7: #{tudui_forward.1} parent=0 // pred_check_branch
    %25 = sbr.rel (0) target = $region9
  $region8: #{tudui_forward.1} parent=0 // pred_region
    _
  $region9: #{tudui_forward.1} parent=0 // pred_fallthru
    _
  // Predicated region
  $region10: #{tudui_forward.1} parent=0 // pred_check
    _
  $region11: #{tudui_forward.1} parent=0 // pred_check_branch
    %27 = sbr.rel (0) target = $region13
  $region12: #{tudui_forward.1} parent=0 // pred_region
    _
  $region13: #{tudui_forward.1} parent=0 // pred_fallthru
    _

</llo_original>
